<compile_context>
chip_gen: v5e
topology: v5e:2x2
jax: 0.10.0
libtpu: 0.0.40
codegen_flags: <defaults>
</compile_context>

<pallas_src>
import functools

import jax
import jax.numpy as jnp
from jax.experimental import pallas as pl
from jax.experimental.pallas import tpu as pltpu


def _chan_ln_kernel(x_ref, gb_ref, o_ref, *, eps, inv_c):
    # x_ref/o_ref: (C, T)    gb_ref: (C, 2)  [col 0 = g, col 1 = b]
    x = x_ref[...].astype(jnp.float32)

    # Fused single-pass statistics over the channel (sublane) axis.
    s1 = jnp.sum(x, axis=0, keepdims=True)            # (1, T)
    s2 = jnp.sum(x * x, axis=0, keepdims=True)        # (1, T)
    mean = s1 * inv_c                                  # (1, T)
    # unbiased=False variance; clamp against catastrophic cancellation.
    var = jnp.maximum(s2 * inv_c - mean * mean, 0.0)   # (1, T)
    inv = jax.lax.rsqrt(var + eps)                     # (1, T)

    g = gb_ref[:, 0:1].astype(jnp.float32)             # (C, 1)
    b = gb_ref[:, 1:2].astype(jnp.float32)             # (C, 1)

    y = (x - mean) * (inv * g) + b                     # (C, T), all per-lane
    o_ref[...] = y.astype(o_ref.dtype)


def _vmem_capacity_bytes():
    """Physical VMEM of the local TPU generation (conservative fallback)."""
    try:
        return int(pltpu.get_tpu_info().vmem_capacity_bytes)
    except Exception:
        return 64 * 1024 * 1024  # v7x-sized fallback: safe on every generation


def _choose_hw_tile(C, hw, itemsize, vmem_budget_bytes):
    """Largest lane tile whose true VMEM footprint fits the budget.

    Footprint per lane column:
      2 (double-buffer) * (in + out) blocks in x dtype
      + ~2x C*4 bytes of f32 temporaries (x.astype(f32), x*x / y)
    with C rounded up to the sublane tile for this dtype.
    Returns hw (full extent, single contiguous DMA) when the whole slab fits,
    otherwise a multiple of 128.
    """
    sublane = max(8, 32 // max(1, itemsize))           # 8 f32 / 16 bf16 / 32 int8
    c_pad = -(-C // sublane) * sublane
    bytes_per_lane = c_pad * (4 * itemsize + 2 * 4)
    max_t = max(128, (vmem_budget_bytes // bytes_per_lane) // 128 * 128)
    if hw <= max_t:
        return hw
    return max_t


def chan_layer_norm_2d(x, g, b, eps=1e-5):
    """x: (N, C, H, W) NCHW; g, b: (1, C, 1, 1). Returns (N, C, H, W)."""
    N, C, H, W = x.shape
    hw = H * W
    itemsize = jnp.dtype(x.dtype).itemsize

    cap = _vmem_capacity_bytes()
    budget = int(cap * 0.6)            # resident blocks + f32 temps stay < physical
    vmem_limit = int(cap * 0.85)       # default scoped limit (16/32 MiB) is too small

    t_hw = _choose_hw_tile(C, hw, itemsize, budget)
    n_t = pl.cdiv(hw, t_hw)

    # v7x has 2 TensorCores: guarantee >= 2 parallel grid steps when possible.
    if N * n_t < 2 and hw > 128:
        half = -(-hw // 2)
        t_hw = max(128, ((half + 127) // 128) * 128)
        n_t = pl.cdiv(hw, t_hw)

    xr = x.reshape(N, C, hw)
    gb = jnp.concatenate(
        [g.reshape(C, 1), b.reshape(C, 1)], axis=-1
    ).astype(jnp.float32)              # (C, 2), stays resident across the grid

    out = pl.pallas_call(
        functools.partial(_chan_ln_kernel, eps=float(eps), inv_c=1.0 / C),
        out_shape=jax.ShapeDtypeStruct((N, C, hw), x.dtype),
        grid=(N, n_t),
        in_specs=[
            pl.BlockSpec((pl.Squeezed(), C, t_hw), lambda n, t: (n, 0, t)),
            pl.BlockSpec((C, 2), lambda n, t: (0, 0)),   # resident across grid
        ],
        out_specs=pl.BlockSpec((pl.Squeezed(), C, t_hw), lambda n, t: (n, 0, t)),
        compiler_params=pltpu.CompilerParams(
            dimension_semantics=("parallel", "parallel"),
            vmem_limit_bytes=vmem_limit,
        ),
    )(xr, gb)

    return out.reshape(N, C, H, W)


def chan_layer_norm_2d_ref(x, g, b, eps=1e-5):
    mean = jnp.mean(x, axis=1, keepdims=True)
    var = jnp.mean((x - mean) ** 2, axis=1, keepdims=True)
    return (x - mean) / jnp.sqrt(var + eps) * g + b


if __name__ == "__main__":
    key = jax.random.PRNGKey(0)
    N, C, H, W = 2, 4, 16, 16
    x = jax.random.normal(key, (N, C, H, W), dtype=jnp.float32)

    # Parameter init matching the nn.Module: g = ones(1,C,1,1), b = zeros(1,C,1,1)
    g = jnp.ones((1, C, 1, 1), dtype=jnp.float32)
    b = jnp.zeros((1, C, 1, 1), dtype=jnp.float32)

    out = chan_layer_norm_2d(x, g, b, eps=1e-5)
    out = jax.block_until_ready(out)

    ref = chan_layer_norm_2d_ref(x, g, b, eps=1e-5)
    assert out.shape == (N, C, H, W)
    # Single-pass E[x^2]-E[x]^2 variance (f32) vs two-pass ref: allow f32 noise.
    assert jnp.allclose(out, ref, atol=1e-4, rtol=1e-4), float(jnp.max(jnp.abs(out - ref)))

    print("KERNEL_OK")
</pallas_src>

<mosaic_0001>
module attributes {stable_mosaic.version = 11 : i64} {
  func.func @_chan_ln_kernel(%arg0: i32, %arg1: i32, %arg2: memref<1x4x256xf32, #tpu.memory_space<vmem>>, %arg3: memref<4x2xf32, #tpu.memory_space<vmem>>, %arg4: memref<1x4x256xf32, #tpu.memory_space<vmem>>) attributes {dimension_semantics = [#tpu.dimension_semantics<parallel>, #tpu.dimension_semantics<parallel>], iteration_bounds = array<i64: 2, 1>, scalar_prefetch = 0 : i64, scratch_operands = 0 : i64, tpu.core_type = #tpu.core_type<tc>, window_params = [{transform_indices = @transform_0, window_bounds = array<i64: 1, 4, 256>}, {pipeline_mode = #tpu.pipeline_mode<synchronous>, transform_indices = @transform_1, window_bounds = array<i64: 4, 2>}, {transform_indices = @transform_2, window_bounds = array<i64: 1, 4, 256>}]} {
    %c0 = arith.constant 0 : index
    %c0_0 = arith.constant 0 : index
    %c0_1 = arith.constant 0 : index
    %0 = vector.load %arg2[%c0, %c0_0, %c0_1] : memref<1x4x256xf32, #tpu.memory_space<vmem>>, vector<1x4x256xf32>
    %1 = vector.shape_cast %0 : vector<1x4x256xf32> to vector<4x256xf32>
    %cst = arith.constant dense<0.000000e+00> : vector<256xf32>
    %2 = vector.multi_reduction <add>, %1, %cst [0] : vector<4x256xf32> to vector<256xf32>
    %3 = vector.shape_cast %2 : vector<256xf32> to vector<1x256xf32>
    %4 = arith.mulf %1, %1 : vector<4x256xf32>
    %cst_2 = arith.constant dense<0.000000e+00> : vector<256xf32>
    %5 = vector.multi_reduction <add>, %4, %cst_2 [0] : vector<4x256xf32> to vector<256xf32>
    %6 = vector.shape_cast %5 : vector<256xf32> to vector<1x256xf32>
    %cst_3 = arith.constant 2.500000e-01 : f32
    %7 = vector.broadcast %cst_3 : f32 to vector<1x256xf32>
    %8 = arith.mulf %3, %7 : vector<1x256xf32>
    %cst_4 = arith.constant 2.500000e-01 : f32
    %9 = vector.broadcast %cst_4 : f32 to vector<1x256xf32>
    %10 = arith.mulf %6, %9 : vector<1x256xf32>
    %11 = arith.mulf %8, %8 : vector<1x256xf32>
    %12 = arith.subf %10, %11 : vector<1x256xf32>
    %cst_5 = arith.constant 0.000000e+00 : f32
    %13 = vector.broadcast %cst_5 : f32 to vector<1x256xf32>
    %14 = arith.maximumf %12, %13 : vector<1x256xf32>
    %cst_6 = arith.constant 9.99999974E-6 : f32
    %15 = vector.broadcast %cst_6 : f32 to vector<1x256xf32>
    %16 = arith.addf %14, %15 : vector<1x256xf32>
    %17 = math.rsqrt %16 : vector<1x256xf32>
    %c0_7 = arith.constant 0 : index
    %c0_8 = arith.constant 0 : index
    %18 = vector.load %arg3[%c0_7, %c0_8] : memref<4x2xf32, #tpu.memory_space<vmem>>, vector<4x1xf32>
    %c0_9 = arith.constant 0 : index
    %c1 = arith.constant 1 : index
    %19 = vector.load %arg3[%c0_9, %c1] : memref<4x2xf32, #tpu.memory_space<vmem>>, vector<4x1xf32>
    %20 = vector.broadcast %8 : vector<1x256xf32> to vector<4x256xf32>
    %21 = arith.subf %1, %20 : vector<4x256xf32>
    %22 = vector.broadcast %17 : vector<1x256xf32> to vector<4x256xf32>
    %23 = vector.broadcast %18 : vector<4x1xf32> to vector<4x256xf32>
    %24 = arith.mulf %22, %23 : vector<4x256xf32>
    %25 = arith.mulf %21, %24 : vector<4x256xf32>
    %26 = vector.broadcast %19 : vector<4x1xf32> to vector<4x256xf32>
    %27 = arith.addf %25, %26 : vector<4x256xf32>
    %c0_10 = arith.constant 0 : index
    %c0_11 = arith.constant 0 : index
    %c0_12 = arith.constant 0 : index
    %28 = vector.load %arg4[%c0_10, %c0_11, %c0_12] : memref<1x4x256xf32, #tpu.memory_space<vmem>>, vector<1x4x256xf32>
    %29 = vector.shape_cast %28 : vector<1x4x256xf32> to vector<4x256xf32>
    %30 = vector.shape_cast %27 : vector<4x256xf32> to vector<1x4x256xf32>
    tpu.vector_store %arg4[%c0_10, %c0_11, %c0_12], %30 {strides = array<i32>} : memref<1x4x256xf32, #tpu.memory_space<vmem>>, vector<1x4x256xf32>,
    return
  }
  func.func @transform_0(%arg0: i32, %arg1: i32) -> (i32, i32, i32) {
    %c0_i32 = arith.constant 0 : i32
    %c0_i32_0 = arith.constant 0 : i32
    return %arg0, %c0_i32, %arg1 : i32, i32, i32
  }
  func.func @transform_1(%arg0: i32, %arg1: i32) -> (i32, i32) {
    %c0_i32 = arith.constant 0 : i32
    %c0_i32_0 = arith.constant 0 : i32
    %c0_i32_1 = arith.constant 0 : i32
    return %c0_i32, %c0_i32_0 : i32, i32
  }
  func.func @transform_2(%arg0: i32, %arg1: i32) -> (i32, i32, i32) {
    %c0_i32 = arith.constant 0 : i32
    %c0_i32_0 = arith.constant 0 : i32
    return %arg0, %c0_i32, %arg1 : i32, i32, i32
  }
}

</mosaic_0001>

<llo_original>
// kernel: tpu_custom_call.1
$region0: #{tpu_custom_call.1}
  #allocation0 [shape = 'u32[]', space=smem, size = 0x4, offset = 0x4, fixed_abs, tag = 'smem constant byte address 0x4 - core index']
  #allocation1 [shape = 'u32[72,128]{1,0:T(1,128)}', space=vmem, size = 0x9000, scoped, tag = 'internal scratch']
  %s0 = inlined_call_operand.hbm [shape: f32[2,4,256], index: 0, kind: input, shape index: {}]
  %s1 = inlined_call_operand.vmem [shape: f32[4,2], index: 1, kind: input, shape index: {}]
  %s2 = inlined_call_operand.hbm [shape: f32[2,4,256], index: 2, kind: output, shape index: {}]
  %s3 = sld [smem:[#allocation0]]
  $region45: #{tpu_custom_call.1} parent=0
    _
  %s5 = ssub.s32 1, %s3
  %s6 = scalar_select 0, %s5, %s3
  $region1: #{tpu_custom_call.1} parent=0
    #allocation2 [shape = 'u8[8192]{0}', space=vmem, size = 0x2000, scoped, tag = 'input window, operand 0']
    #allocation3 [shape = 's32[2]{0}', space=sflag, size = 0x8, scoped, tag = 'scoped memory for tpu_custom_call.1']
    #allocation4 [shape = 's32[2]{0}', space=sflag, size = 0x8, scoped, tag = 'scoped memory for tpu_custom_call.1']
    #allocation5 [shape = 'u8[8192]{0}', space=vmem, size = 0x2000, scoped, tag = 'output window, operand 0']
    %7 = vsyncpa [#allocation3], 0
    %s8 = scalar_lea.sflag [#allocation3], 1
    %9 = vsyncpa %s8, 0
    %10 = vsyncpa [#allocation4], 0
    %s11 = scalar_lea.sflag [#allocation4], 1
    %12 = vsyncpa %s11, 0
    loop: start=0, step=1, limit=4
    $region2: #{tpu_custom_call.1} parent=1 // loop_pre_header
      _
    $region3: #{tpu_custom_call.1} parent=1 // loop_header
      %s14 = sphi 0, %s18
      %p15 = scmp.ge.s32.totalorder %s14, 4
      %s21 = sphi 0, %s33
      %s22 = sphi 0, %s29
      %s23 = sphi 0, %s21
      %s24 = sphi 0, %s22
      %s25 = sphi 0, %s23
      %s26 = sphi 0, %s24
      %s38 = sphi 0, %s40
      %s41 = sphi 0, %s38
      %s42 = sphi 0, %s41
      %s58 = sphi 0, %s42
      %s62 = sphi 0, %s62
      %s64 = sphi 0, %s62
      %s65 = sphi 0, %s64
      %s79 = sphi 0, %s65
      %s87 = sphi 0, %s89
      %s90 = sphi 0, %s87
      %s91 = sphi 0, %s90
      %s107 = sphi 0, %s91
    $region4: #{tpu_custom_call.1} parent=1 // loop_header_branch
      %17 = sbr.rel (%p15) target = $region8
    $region5: #{tpu_custom_call.1} parent=1 // loop_body
      %s19 = ssub.s32 %s14, 1
      %s20 = ssub.s32 %s14, 2
      %s27 = sadd.s32 1, %s22
      %p28 = scmp.ge.s32.totalorder %s27, 1
      %s29 = scalar_select %p28, 0, %s27
      %s30 = sadd.s32 1, %s21
      %s31 = scalar_select %p28, %s30, %s21
      %p32 = scmp.ge.s32.totalorder %s31, 2
      %s33 = scalar_select %p32, 0, %s31
      %s34 = ssub.s32 %s21, %s33
      %s35 = ssub.s32 %s22, %s29
      %s36 = sor.u32 %s34, %s35
      %p37 = scmp.eq.s32.totalorder %s36, 0
      %s39 = sadd.s32 %s38, 1
      %s40 = scalar_select %p37, %s38, %s39
      %p43 = pneg %p37
      %p44 = scmp.eq.s32.totalorder %s14, 1
      %p45 = por %p43, %p44
      %p46 = scmp.ne.s32.totalorder %s38, %s41
      %p47 = scmp.eq.s32.totalorder %s14, 0
      %p48 = por %p46, %p47
      %p49 = scmp.ne.s32.totalorder %s38, %s41
      %p50 = scmp.eq.s32.totalorder %s19, 1
      %p51 = por %p49, %p50
      %p52 = scmp.ne.s32.totalorder %s41, %s42
      %p53 = scmp.eq.s32.totalorder %s19, 0
      %p54 = por %p52, %p53
      %p55 = scmp.ne.s32.totalorder %s41, %s42
      %p56 = scmp.eq.s32.totalorder %s20, 1
      %p57 = por %p55, %p56
      %p59 = scmp.ne.s32.totalorder %s42, %s58
      %p60 = scmp.eq.s32.totalorder %s20, 0
      %p61 = por %p59, %p60
      %s63 = sadd.s32 %s62, 1
      %p66 = scmp.eq.s32.totalorder %s14, 1
      %p67 = scmp.ne.s32.totalorder %s62, %s64
      %p68 = scmp.eq.s32.totalorder %s14, 0
      %p69 = por %p67, %p68
      %p70 = scmp.ne.s32.totalorder %s62, %s64
      %p71 = scmp.eq.s32.totalorder %s19, 1
      %p72 = por %p70, %p71
      %p73 = scmp.ne.s32.totalorder %s64, %s65
      %p74 = scmp.eq.s32.totalorder %s19, 0
      %p75 = por %p73, %p74
      %p76 = scmp.ne.s32.totalorder %s64, %s65
      %p77 = scmp.eq.s32.totalorder %s20, 1
      %p78 = por %p76, %p77
      %p80 = scmp.ne.s32.totalorder %s65, %s79
      %p81 = scmp.eq.s32.totalorder %s20, 0
      %p82 = por %p80, %p81
      %s83 = ssub.s32 %s21, %s33
      %s84 = ssub.s32 %s22, %s29
      %s85 = sor.u32 %s83, %s84
      %p86 = scmp.eq.s32.totalorder %s85, 0
      %s88 = sadd.s32 %s87, 1
      %s89 = scalar_select %p86, %s87, %s88
      %p92 = pneg %p86
      %p93 = scmp.eq.s32.totalorder %s14, 1
      %p94 = por %p92, %p93
      %p95 = scmp.ne.s32.totalorder %s87, %s90
      %p96 = scmp.eq.s32.totalorder %s14, 0
      %p97 = por %p95, %p96
      %p98 = scmp.ne.s32.totalorder %s87, %s90
      %p99 = scmp.eq.s32.totalorder %s19, 1
      %p100 = por %p98, %p99
      %p101 = scmp.ne.s32.totalorder %s90, %s91
      %p102 = scmp.eq.s32.totalorder %s19, 0
      %p103 = por %p101, %p102
      %p104 = scmp.ne.s32.totalorder %s90, %s91
      %p105 = scmp.eq.s32.totalorder %s20, 1
      %p106 = por %p104, %p105
      %p108 = scmp.ne.s32.totalorder %s91, %s107
      %p109 = scmp.eq.s32.totalorder %s20, 0
      %p110 = por %p108, %p109
      %p111 = scmp.le.s32.totalorder 1, %s14
      %p112 = scmp.lt.s32.totalorder %s14, 3
      %p113 = pnand %p111, %p112
      %p114 = pneg %p113
      // Predicated region
      $region9: #{tpu_custom_call.1} parent=5 // pred_check
        _
      $region10: #{tpu_custom_call.1} parent=5 // pred_check_branch
        %116 = sbr.rel (%p113) target = $region12
      $region11: #{tpu_custom_call.1} parent=5 // pred_region
        %s117 = ssub.s32 %s14, 1
        // Predicated region
        $region13: #{tpu_custom_call.1} parent=11 // pred_check
          %p118 = pneg %p75
        $region14: #{tpu_custom_call.1} parent=11 // pred_check_branch
          %120 = sbr.rel (%p118) target = $region16
        $region15: #{tpu_custom_call.1} parent=11 // pred_region
          _
        $region16: #{tpu_custom_call.1} parent=11 // pred_fallthru
          _
      $region12: #{tpu_custom_call.1} parent=5 // pred_fallthru
        _
      %p121 = scmp.lt.s32.totalorder %s14, 2
      // Predicated region
      $region17: #{tpu_custom_call.1} parent=5 // pred_check
        %p122 = pneg %p121
      $region18: #{tpu_custom_call.1} parent=5 // pred_check_branch
        %124 = sbr.rel (%p122) target = $region20
      $region19: #{tpu_custom_call.1} parent=5 // pred_region
        // Predicated region
        $region21: #{tpu_custom_call.1} parent=19 // pred_check
          %p125 = pneg %p48
        $region22: #{tpu_custom_call.1} parent=19 // pred_check_branch
          %127 = sbr.rel (%p125) target = $region24
        $region23: #{tpu_custom_call.1} parent=19 // pred_region
          %s128 = sand.u32 %s38, 1
          %s129 = scalar_lea.sflag [#allocation3], %s128
          %s130 = sand.u32 %s38, 1
          %s131 = smul.addr %s130, 8
          %s132 = scalar_lea.vmem [#allocation2], %s131
          %s133 = smul.u32 2, %s22
          %135 = vsyncadd %s129, 0
          %s136 = smul.addr %s21, 2
          %s137 = sadd.s32 %s133, %s136
          %s138 = smul.addr %s137, 4
          %s139 = scalar_lea.hbm %s0, %s138
          %s141 = sshll.u32 %s139, 4
          %s142 = int_to_ptr.hbm [resolvable:$true] %s141
          %s143 = sshll.u32 %s132, 4
          %s144 = int_to_ptr.vmem [resolvable:$true] %s143
          %146 = dma.hbm_to_vmem [thread:$0]  %s142, 128, %s144, %s129
        $region24: #{tpu_custom_call.1} parent=19 // pred_fallthru
          _
      $region20: #{tpu_custom_call.1} parent=5 // pred_fallthru
        _
      %p147 = scmp.le.s32.totalorder 1, %s14
      %p148 = scmp.lt.s32.totalorder %s14, 3
      %p149 = pnand %p147, %p148
      %p150 = pneg %p149
      // Predicated region
      $region25: #{tpu_custom_call.1} parent=5 // pred_check
        _
      $region26: #{tpu_custom_call.1} parent=5 // pred_check_branch
        %152 = sbr.rel (%p149) target = $region28
      $region27: #{tpu_custom_call.1} parent=5 // pred_region
        %s153 = ssub.s32 %s14, 1
        %s154 = sand.u32 %s41, 1
        %s155 = scalar_lea.sflag [#allocation3], %s154
        %s156 = sand.u32 %s41, 1
        %s157 = smul.addr %s156, 8
        %s158 = scalar_lea.vmem [#allocation2], %s157
        // Predicated region
        $region29: #{tpu_custom_call.1} parent=27 // pred_check
          %p159 = pneg %p54
        $region30: #{tpu_custom_call.1} parent=27 // pred_check_branch
          %161 = sbr.rel (%p159) target = $region32
        $region31: #{tpu_custom_call.1} parent=27 // pred_region
          %163 = dma.done %s155, 128
        $region32: #{tpu_custom_call.1} parent=27 // pred_fallthru
          _
        %s164 = sand.u32 %s41, 1
        %s165 = scalar_lea.sflag [#allocation3], %s164
        %s166 = sand.u32 %s41, 1
        %s167 = smul.addr %s166, 8
        %s168 = scalar_lea.vmem [#allocation2], %s167
        %p169 = pneg %p54
        %p170 = pneg %p51
        %p171 = pneg %p75
        %p172 = pneg %p72
        %p173 = pneg %p103
        %p174 = pneg %p100
        %s175 = sand.u32 %s90, 1
        %s176 = scalar_lea.sflag [#allocation4], %s175
        %s177 = sand.u32 %s90, 1
        %s178 = smul.addr %s177, 8
        %s179 = scalar_lea.vmem [#allocation5], %s178
        %s180 = smul.u32 2, %s24
        %s181 = smul.u32 2, %s24
        %v182 = vld [vmem:[%s158] sm:$0xff]
        %184 = vst [vmem:[#allocation1] ss:$2 sm:$0xff] %v182
        %v185 = vld.sshfl [vmem:[#allocation1] sm:$0xff pattern:$0x75316420]
        %v186 = vld.sshfl [vmem:[#allocation1 + $0x8] sm:$0xff pattern:$0x75316420]
        %vm189 = vcmask 1043456
        %v190 = vsel %vm189, %v185, 0.0
        %v191 = vrot.slane %v190, 4
        %v192 = vadd.f32 %v190, %v191
        %v193 = vrot.slane %v192, 2
        %v194 = vadd.f32 %v192, %v193
        %v195 = vrot.slane %v194, 1
        %v196 = vadd.f32 %v194, %v195
        %v197 = vsel %vm189, %v186, 0.0
        %v198 = vrot.slane %v197, 4
        %v199 = vadd.f32 %v197, %v198
        %v200 = vrot.slane %v199, 2
        %v201 = vadd.f32 %v199, %v200
        %v202 = vrot.slane %v201, 1
        %v203 = vadd.f32 %v201, %v202
        %v204 = vmul.f32 %v182, %v182
        %206 = vst [vmem:[#allocation1] ss:$2 sm:$0xff] %v204
        %v207 = vld.sshfl [vmem:[#allocation1] sm:$0xff pattern:$0x75316420]
        %v208 = vld.sshfl [vmem:[#allocation1 + $0x8] sm:$0xff pattern:$0x75316420]
        %v211 = vsel %vm189, %v207, 0.0
        %v212 = vrot.slane %v211, 4
        %v213 = vadd.f32 %v211, %v212
        %v214 = vrot.slane %v213, 2
        %v215 = vadd.f32 %v213, %v214
        %v216 = vrot.slane %v215, 1
        %v217 = vadd.f32 %v215, %v216
        %v218 = vsel %vm189, %v208, 0.0
        %v219 = vrot.slane %v218, 4
        %v220 = vadd.f32 %v218, %v219
        %v221 = vrot.slane %v220, 2
        %v222 = vadd.f32 %v220, %v221
        %v223 = vrot.slane %v222, 1
        %v224 = vadd.f32 %v222, %v223
        %v225 = vmul.f32 %v196, 0.25
        %v226 = vmul.f32 %v203, 0.25
        %v227 = vmul.f32 %v217, 0.25
        %v228 = vmul.f32 %v224, 0.25
        %v229 = vmul.f32 %v225, %v225
        %v230 = vmul.f32 %v226, %v226
        %v231 = vsub.f32 %v227, %v229
        %v232 = vsub.f32 %v228, %v230
        %v233 = vmax.f32 %v231, 0.0
        %v234 = vmax.f32 %v232, 0.0
        %v235 = vadd.f32 %v233, 1e-05
        %v236 = vadd.f32 %v234, 1e-05
        %v237 = vrsqrt.pop %v235
        %v238 = vmul.f32 %v237, %v235
        %v239 = vmul.f32 %v238, %v237
        %v240 = vmul.f32 0.5, %v239
        %v241 = vsub.f32 1.5, %v240
        %v242 = vmul.f32 %v237, %v241
        %vm243 = vweird.f32 %v235
        %vm244 = vweird.f32 %v237
        %vm245 = vmor %vm243, %vm244
        %v246 = vsel %vm245, %v237, %v242
        %v247 = vrsqrt.pop %v236
        %v248 = vmul.f32 %v247, %v236
        %v249 = vmul.f32 %v248, %v247
        %v250 = vmul.f32 0.5, %v249
        %v251 = vsub.f32 1.5, %v250
        %v252 = vmul.f32 %v247, %v251
        %vm253 = vweird.f32 %v236
        %vm254 = vweird.f32 %v247
        %vm255 = vmor %vm253, %vm254
        %v256 = vsel %vm255, %v247, %v252
        %v257 = vld [vmem:[%s1] sm:$0xf]
        %v260 = vrot.slane %v226, 4
        %v261 = vsel %vm189, %v225, %v260
        %v263 = vsub.f32 %v182, %v261
        %265 = vset.pattern.permute.xlu0 0
        %266 = vperm.xlu0 %265, %v257
        %v267 = vpop.permute.xlu0 %266
        %v269 = vmul.f32 %v246, %v267
        %v270 = vmul.f32 %v256, %v267
        %v273 = vrot.slane %v270, 4
        %v274 = vsel %vm189, %v269, %v273
        %v276 = vmul.f32 %v263, %v274
        %277 = vset.pattern.permute.xlu0 1
        %278 = vperm.xlu0 %277, %v257
        %v279 = vpop.permute.xlu0 %278
        %v281 = vunpack.c.l.s4 839922192
        %v282 = vunpack.c.0.s8 %v281
        %v283 = vperm.slane %v279, %v282
        %v285 = vadd.f32 %v276, %v283
        %286 = vst [vmem:[%s179] sm:$0xff] %v285
        %s287 = sand.u32 %s90, 1
        %s288 = scalar_lea.sflag [#allocation4], %s287
        %s289 = sand.u32 %s90, 1
        %s290 = smul.addr %s289, 8
        %s291 = scalar_lea.vmem [#allocation5], %s290
        // Predicated region
        $region33: #{tpu_custom_call.1} parent=27 // pred_check
          %p292 = pneg %p100
        $region34: #{tpu_custom_call.1} parent=27 // pred_check_branch
          %294 = sbr.rel (%p292) target = $region36
        $region35: #{tpu_custom_call.1} parent=27 // pred_region
          %s295 = smul.u32 2, %s24
          %297 = vsyncadd %s288, 0
          %s298 = smul.addr %s23, 2
          %s299 = sadd.s32 %s295, %s298
          %s300 = smul.addr %s299, 4
          %s301 = scalar_lea.hbm %s2, %s300
          %s303 = sshll.u32 %s291, 4
          %s304 = int_to_ptr.vmem [resolvable:$true] %s303
          %s305 = sshll.u32 %s301, 4
          %s306 = int_to_ptr.hbm [resolvable:$true] %s305
          %308 = dma.vmem_to_hbm [thread:$0]  %s304, 128, %s306, %s288
        $region36: #{tpu_custom_call.1} parent=27 // pred_fallthru
          _
      $region28: #{tpu_custom_call.1} parent=5 // pred_fallthru
        _
      %p309 = scmp.le.s32.totalorder 2, %s14
      // Predicated region
      $region37: #{tpu_custom_call.1} parent=5 // pred_check
        %p310 = pneg %p309
      $region38: #{tpu_custom_call.1} parent=5 // pred_check_branch
        %312 = sbr.rel (%p310) target = $region40
      $region39: #{tpu_custom_call.1} parent=5 // pred_region
        %s313 = ssub.s32 %s14, 2
        // Predicated region
        $region41: #{tpu_custom_call.1} parent=39 // pred_check
          %p314 = pneg %p106
        $region42: #{tpu_custom_call.1} parent=39 // pred_check_branch
          %316 = sbr.rel (%p314) target = $region44
        $region43: #{tpu_custom_call.1} parent=39 // pred_region
          %s317 = sand.u32 %s91, 1
          %s318 = scalar_lea.sflag [#allocation4], %s317
          %s319 = sand.u32 %s91, 1
          %s320 = smul.addr %s319, 8
          %s321 = scalar_lea.vmem [#allocation5], %s320
          %323 = dma.done %s318, 128
        $region44: #{tpu_custom_call.1} parent=39 // pred_fallthru
          _
      $region40: #{tpu_custom_call.1} parent=5 // pred_fallthru
        _
    $region6: #{tpu_custom_call.1} parent=1 // loop_footer
      %s18 = sadd.s32 1, %s14
    $region7: #{tpu_custom_call.1} parent=1 // loop_footer_branch
      %13 = sbr.rel target = $region3
    $region8: #{tpu_custom_call.1} parent=1 // loop_exit
      _
    %324 = vsyncpa [#allocation3], 1
    %s325 = scalar_lea.sflag [#allocation3], 1
    %326 = vsyncpa %s325, 1
    %327 = vsyncpa [#allocation4], 1
    %s328 = scalar_lea.sflag [#allocation4], 1
    %329 = vsyncpa %s328, 1

</llo_original>
